<compile_context>
chip_gen: v7x
topology: tpu7x:2x2x1
jax: 0.10.0
libtpu: 0.0.40
codegen_flags: <defaults>
</compile_context>

<pallas_src>
import functools

import jax
import jax.numpy as jnp
import numpy as np
from jax.experimental import pallas as pl
from jax.experimental.pallas import tpu as pltpu


def _head_kernel(x_ref, w1_ref, b1_ref, w2_ref, b2_ref, out_ref, *,
                 n_channels, spatial):
    """One hidden-tile step of the fused head (grid axis 0 = hidden tiles).

    x_ref  : (B, C*HW)        f32   resident across all steps (same block)
    w1_ref : (C, tile_h)      f32   layer-1 tile (1/(H*W) mean scale folded in)
    b1_ref : (1, tile_h)      f32
    w2_ref : (tile_h, N_pad)  bf16  layer-2 tile (time-cumsum folded in, padded)
    b2_ref : (1, N_pad)       f32   (cumsum folded in, padded)
    out_ref: (B, N_pad)       f32   lane-dense accumulator, one HBM writeback
    """
    x = x_ref[...]                                            # (B, C*HW) f32
    w1 = w1_ref[...]                                          # (C, tile_h) f32

    # Global average pool + first linear for this hidden tile.  C is tiny for
    # the proxy head, so the K=C contraction is C broadcast-FMAs on the VPU
    # over lane-aligned channel slices (the mean scale lives in w1).
    # TODO(synk): switch to a single bf16 MXU dot once C reaches backbone scale.
    s0 = jnp.sum(x[:, 0:spatial], axis=-1, keepdims=True)     # (B, 1)
    acc = s0 * w1[0:1, :]
    for c in range(1, n_channels):                            # static unroll
        sc = jnp.sum(x[:, c * spatial:(c + 1) * spatial], axis=-1,
                     keepdims=True)
        acc = acc + sc * w1[c:c + 1, :]
    h = jnp.maximum(acc + b1_ref[...], 0.0)                   # (B, tile_h) f32

    # Partial second GEMM on the bf16 MXU path, f32 accumulation.  The cumsum
    # over time is folded into w2/b2, so the accumulated result is already the
    # final (conf || cumsummed-traj) logits, zero-padded to 128 lanes.
    contrib = jnp.dot(h.astype(jnp.bfloat16), w2_ref[...],
                      preferred_element_type=jnp.float32)     # (B, N_pad) f32

    @pl.when(pl.program_id(0) == 0)
    def _():
        out_ref[...] = b2_ref[...] + contrib

    @pl.when(pl.program_id(0) != 0)
    def _():
        out_ref[...] = out_ref[...] + contrib


def _make_cumsum_matrix(n_traj, time_limit):
    """C[i, j] = 1 iff flat rest-index i contributes to cumsum output j."""
    n_rest = n_traj * time_limit * 3
    idx = np.arange(n_rest)
    traj = idx // (time_limit * 3)
    t = (idx // 3) % time_limit
    ch = idx % 3
    mat = ((traj[:, None] == traj[None, :]) &
           (ch[:, None] == ch[None, :]) &
           (t[:, None] <= t[None, :])).astype(np.float32)
    return jnp.asarray(mat)


def prepare_params(w1, b1, w2, b2, *, n_traj, time_limit, spatial_size):
    """Offline algebraic folding (run once, outside the hot path)."""
    n_out = w2.shape[1]
    n_pad = ((n_out + 127) // 128) * 128
    cmat = _make_cumsum_matrix(n_traj, time_limit)

    # Fold the time-cumsum into layer 2: h @ (w2_rest @ C) + b2_rest @ C.
    w2f = jnp.concatenate([w2[:, :n_traj], jnp.dot(w2[:, n_traj:], cmat)],
                          axis=1)
    b2f = jnp.concatenate([b2[:, :n_traj], jnp.dot(b2[:, n_traj:], cmat)],
                          axis=1)
    # Zero-pad output columns to a multiple of 128 (lane-dense stores).
    w2f = jnp.pad(w2f, ((0, 0), (0, n_pad - n_out)))
    b2f = jnp.pad(b2f, ((0, 0), (0, n_pad - n_out)))

    # Fold the 1/(H*W) mean scale into w1 so the kernel pools with a plain sum.
    # w1/b1 stay f32 (tiny); only the dominant w2 goes bf16.
    w1s = (w1 / float(spatial_size)).astype(jnp.float32)
    return (w1s, b1.astype(jnp.float32),
            w2f.astype(jnp.bfloat16), b2f.astype(jnp.float32))


def model_forward(x, params, *, n_traj, time_limit, tile_h=512):
    w1s, b1f, w2f, b2f = params
    B, C, H, W = x.shape
    HW = H * W
    n_hidden = w1s.shape[1]
    n_pad = w2f.shape[1]
    n_out = n_traj * 3 * time_limit + n_traj

    tile_h = min(tile_h, n_hidden)
    assert n_hidden % tile_h == 0, "n_hidden must be divisible by tile_h"
    assert HW % 128 == 0, "spatial size must be lane-aligned (multiple of 128)"
    n_steps = n_hidden // tile_h

    # x stays f32; reshape(B, C*HW) is a contiguous view of NCHW (no layout
    # rewrite, no cast, no batch padding) and is a tile-aligned 2D block.
    x2d = x.reshape(B, C * HW)

    kernel = functools.partial(_head_kernel, n_channels=C, spatial=HW)

    cost = pl.CostEstimate(
        flops=2 * B * n_hidden * (C + n_pad),
        transcendentals=0,
        bytes_accessed=(x2d.size * 4 + w1s.size * 4 + b1f.size * 4 +
                        w2f.size * 2 + b2f.size * 4 + B * n_pad * 4),
    )

    out = pl.pallas_call(
        kernel,
        out_shape=jax.ShapeDtypeStruct((B, n_pad), jnp.float32),
        grid=(n_steps,),
        in_specs=[
            pl.BlockSpec((B, C * HW), lambda k: (0, 0)),     # resident
            pl.BlockSpec((C, tile_h), lambda k: (0, k)),     # streamed
            pl.BlockSpec((1, tile_h), lambda k: (0, k)),     # streamed
            pl.BlockSpec((tile_h, n_pad), lambda k: (k, 0)),  # streamed (dominant)
            pl.BlockSpec((1, n_pad), lambda k: (0, 0)),      # resident
        ],
        out_specs=pl.BlockSpec((B, n_pad), lambda k: (0, 0)),
        compiler_params=pltpu.CompilerParams(
            dimension_semantics=("arbitrary",)),              # reduction axis
        cost_estimate=cost,
    )(x2d, w1s, b1f, w2f, b2f)

    # Glue: strip lane padding, split confidences / trajectory logits.
    conf = out[:, :n_traj]
    logits = out[:, n_traj:n_out].reshape(B, n_traj, time_limit, 3)
    return conf, logits


def reference_forward(x, w1, b1, w2, b2, *, n_traj, time_limit):
    """Pure-JAX f32 reference matching the module's forward semantics."""
    feat = jnp.mean(x.astype(jnp.float32), axis=(2, 3))
    h = jnp.maximum(feat @ w1 + b1, 0.0)
    out = h @ w2 + b2
    conf = out[:, :n_traj]
    logits = out[:, n_traj:].reshape(-1, n_traj, time_limit, 3)
    return conf, jnp.cumsum(logits, axis=2)


if __name__ == "__main__":
    # Small shapes consistent with the module's forward.
    B, C, H, W = 2, 4, 16, 16
    n_traj, time_limit = 4, 8
    n_hidden = 2 ** 11                     # as in the module (2048)
    n_out = n_traj * 3 * time_limit + n_traj

    key = jax.random.PRNGKey(0)
    kx, k1, k2, k3, k4 = jax.random.split(key, 5)

    x = jax.random.normal(kx, (B, C, H, W), dtype=jnp.float32)
    w1 = jax.random.normal(k1, (C, n_hidden), dtype=jnp.float32) * 0.05
    b1 = jax.random.normal(k2, (1, n_hidden), dtype=jnp.float32) * 0.01
    w2 = jax.random.normal(k3, (n_hidden, n_out), dtype=jnp.float32) * 0.02
    b2 = jax.random.normal(k4, (1, n_out), dtype=jnp.float32) * 0.01

    # Offline weight folding (cumsum matrix, mean scale, lane padding, bf16 w2).
    params = prepare_params(w1, b1, w2, b2, n_traj=n_traj,
                            time_limit=time_limit, spatial_size=H * W)

    fwd = jax.jit(functools.partial(model_forward, n_traj=n_traj,
                                    time_limit=time_limit))
    conf, logits = fwd(x, params)
    jax.block_until_ready((conf, logits))

    # Sanity check against the full-precision pure-JAX reference (bf16 w2 in
    # the kernel with f32 accumulation -> loose-but-meaningful tolerance).
    conf_ref, logits_ref = reference_forward(
        x, w1, b1, w2, b2, n_traj=n_traj, time_limit=time_limit)
    np.testing.assert_allclose(np.asarray(conf), np.asarray(conf_ref),
                               rtol=2e-2, atol=2e-3)
    np.testing.assert_allclose(np.asarray(logits), np.asarray(logits_ref),
                               rtol=2e-2, atol=2e-3)

    assert conf.shape == (B, n_traj)
    assert logits.shape == (B, n_traj, time_limit, 3)
    print("KERNEL_OK")
</pallas_src>

<mosaic_0001>
module attributes {stable_mosaic.version = 11 : i64} {
  func.func @_head_kernel(%arg0: i32, %arg1: memref<2x1024xf32, #tpu.memory_space<vmem>>, %arg2: memref<4x512xf32, #tpu.memory_space<vmem>>, %arg3: memref<1x512xf32, #tpu.memory_space<vmem>>, %arg4: memref<512x128xbf16, #tpu.memory_space<vmem>>, %arg5: memref<1x128xf32, #tpu.memory_space<vmem>>, %arg6: memref<2x128xf32, #tpu.memory_space<vmem>>) attributes {dimension_semantics = [#tpu.dimension_semantics<arbitrary>], iteration_bounds = array<i64: 4>, scalar_prefetch = 0 : i64, scratch_operands = 0 : i64, tpu.core_type = #tpu.core_type<tc>, window_params = [{pipeline_mode = #tpu.pipeline_mode<synchronous>, transform_indices = @transform_0, window_bounds = array<i64: 2, 1024>}, {transform_indices = @transform_1, window_bounds = array<i64: 4, 512>}, {transform_indices = @transform_2, window_bounds = array<i64: 1, 512>}, {transform_indices = @transform_3, window_bounds = array<i64: 512, 128>}, {pipeline_mode = #tpu.pipeline_mode<synchronous>, transform_indices = @transform_4, window_bounds = array<i64: 1, 128>}, {pipeline_mode = #tpu.pipeline_mode<synchronous>, transform_indices = @transform_5, window_bounds = array<i64: 2, 128>}]} {
    %c0 = arith.constant 0 : index
    %c0_0 = arith.constant 0 : index
    %0 = vector.load %arg1[%c0, %c0_0] : memref<2x1024xf32, #tpu.memory_space<vmem>>, vector<2x1024xf32>
    %c0_1 = arith.constant 0 : index
    %c0_2 = arith.constant 0 : index
    %1 = vector.load %arg2[%c0_1, %c0_2] : memref<4x512xf32, #tpu.memory_space<vmem>>, vector<4x512xf32>
    %2 = vector.extract_strided_slice %0 {offsets = [0, 0], sizes = [2, 256], strides = [1, 1]} : vector<2x1024xf32> to vector<2x256xf32>
    %cst = arith.constant dense<0.000000e+00> : vector<2xf32>
    %3 = vector.multi_reduction <add>, %2, %cst [1] : vector<2x256xf32> to vector<2xf32>
    %4 = vector.shape_cast %3 : vector<2xf32> to vector<2x1xf32>
    %5 = vector.extract_strided_slice %1 {offsets = [0, 0], sizes = [1, 512], strides = [1, 1]} : vector<4x512xf32> to vector<1x512xf32>
    %6 = vector.broadcast %4 : vector<2x1xf32> to vector<2x512xf32>
    %7 = vector.broadcast %5 : vector<1x512xf32> to vector<2x512xf32>
    %8 = arith.mulf %6, %7 : vector<2x512xf32>
    %9 = vector.extract_strided_slice %0 {offsets = [0, 256], sizes = [2, 256], strides = [1, 1]} : vector<2x1024xf32> to vector<2x256xf32>
    %cst_3 = arith.constant dense<0.000000e+00> : vector<2xf32>
    %10 = vector.multi_reduction <add>, %9, %cst_3 [1] : vector<2x256xf32> to vector<2xf32>
    %11 = vector.shape_cast %10 : vector<2xf32> to vector<2x1xf32>
    %12 = vector.extract_strided_slice %1 {offsets = [1, 0], sizes = [1, 512], strides = [1, 1]} : vector<4x512xf32> to vector<1x512xf32>
    %13 = vector.broadcast %11 : vector<2x1xf32> to vector<2x512xf32>
    %14 = vector.broadcast %12 : vector<1x512xf32> to vector<2x512xf32>
    %15 = arith.mulf %13, %14 : vector<2x512xf32>
    %16 = arith.addf %8, %15 : vector<2x512xf32>
    %17 = vector.extract_strided_slice %0 {offsets = [0, 512], sizes = [2, 256], strides = [1, 1]} : vector<2x1024xf32> to vector<2x256xf32>
    %cst_4 = arith.constant dense<0.000000e+00> : vector<2xf32>
    %18 = vector.multi_reduction <add>, %17, %cst_4 [1] : vector<2x256xf32> to vector<2xf32>
    %19 = vector.shape_cast %18 : vector<2xf32> to vector<2x1xf32>
    %20 = vector.extract_strided_slice %1 {offsets = [2, 0], sizes = [1, 512], strides = [1, 1]} : vector<4x512xf32> to vector<1x512xf32>
    %21 = vector.broadcast %19 : vector<2x1xf32> to vector<2x512xf32>
    %22 = vector.broadcast %20 : vector<1x512xf32> to vector<2x512xf32>
    %23 = arith.mulf %21, %22 : vector<2x512xf32>
    %24 = arith.addf %16, %23 : vector<2x512xf32>
    %25 = vector.extract_strided_slice %0 {offsets = [0, 768], sizes = [2, 256], strides = [1, 1]} : vector<2x1024xf32> to vector<2x256xf32>
    %cst_5 = arith.constant dense<0.000000e+00> : vector<2xf32>
    %26 = vector.multi_reduction <add>, %25, %cst_5 [1] : vector<2x256xf32> to vector<2xf32>
    %27 = vector.shape_cast %26 : vector<2xf32> to vector<2x1xf32>
    %28 = vector.extract_strided_slice %1 {offsets = [3, 0], sizes = [1, 512], strides = [1, 1]} : vector<4x512xf32> to vector<1x512xf32>
    %29 = vector.broadcast %27 : vector<2x1xf32> to vector<2x512xf32>
    %30 = vector.broadcast %28 : vector<1x512xf32> to vector<2x512xf32>
    %31 = arith.mulf %29, %30 : vector<2x512xf32>
    %32 = arith.addf %24, %31 : vector<2x512xf32>
    %c0_6 = arith.constant 0 : index
    %c0_7 = arith.constant 0 : index
    %33 = vector.load %arg3[%c0_6, %c0_7] : memref<1x512xf32, #tpu.memory_space<vmem>>, vector<1x512xf32>
    %34 = vector.broadcast %33 : vector<1x512xf32> to vector<2x512xf32>
    %35 = arith.addf %32, %34 : vector<2x512xf32>
    %cst_8 = arith.constant 0.000000e+00 : f32
    %36 = vector.broadcast %cst_8 : f32 to vector<2x512xf32>
    %37 = arith.maximumf %35, %36 : vector<2x512xf32>
    %38 = arith.truncf %37 : vector<2x512xf32> to vector<2x512xbf16>
    %c0_9 = arith.constant 0 : index
    %c0_10 = arith.constant 0 : index
    %39 = vector.load %arg4[%c0_9, %c0_10] : memref<512x128xbf16, #tpu.memory_space<vmem>>, vector<512x128xbf16>
    %cst_11 = arith.constant dense<0.000000e+00> : vector<2x128xf32>
    %40 = tpu.matmul %38, %39, %cst_11 {dimension_numbers = #tpu.dot_dimension_numbers<[1], [0], [0], [1], [0, 0, 1, 1], [], []>} : vector<2x512xbf16>, vector<512x128xbf16>, vector<2x128xf32> -> vector<2x128xf32>
    %c0_i32 = arith.constant 0 : i32
    %41 = arith.cmpi eq, %arg0, %c0_i32 : i32
    %42 = arith.extui %41 : i1 to i32
    %c0_i32_12 = arith.constant 0 : i32
    %43 = arith.cmpi ne, %42, %c0_i32_12 : i32
    scf.if %43 {
      %c0_15 = arith.constant 0 : index
      %c0_16 = arith.constant 0 : index
      %47 = vector.load %arg5[%c0_15, %c0_16] : memref<1x128xf32, #tpu.memory_space<vmem>>, vector<1x128xf32>
      %48 = vector.broadcast %47 : vector<1x128xf32> to vector<2x128xf32>
      %49 = arith.addf %48, %40 : vector<2x128xf32>
      %c0_17 = arith.constant 0 : index
      %c0_18 = arith.constant 0 : index
      %50 = vector.load %arg6[%c0_17, %c0_18] : memref<2x128xf32, #tpu.memory_space<vmem>>, vector<2x128xf32>
      tpu.vector_store %arg6[%c0_17, %c0_18], %49 {strides = array<i32>} : memref<2x128xf32, #tpu.memory_space<vmem>>, vector<2x128xf32>,
    } else {
    }
    %c0_i32_13 = arith.constant 0 : i32
    %44 = arith.cmpi ne, %arg0, %c0_i32_13 : i32
    %45 = arith.extui %44 : i1 to i32
    %c0_i32_14 = arith.constant 0 : i32
    %46 = arith.cmpi ne, %45, %c0_i32_14 : i32
    scf.if %46 {
      %c0_15 = arith.constant 0 : index
      %c0_16 = arith.constant 0 : index
      %47 = vector.load %arg6[%c0_15, %c0_16] : memref<2x128xf32, #tpu.memory_space<vmem>>, vector<2x128xf32>
      %48 = arith.addf %47, %40 : vector<2x128xf32>
      %c0_17 = arith.constant 0 : index
      %c0_18 = arith.constant 0 : index
      %49 = vector.load %arg6[%c0_17, %c0_18] : memref<2x128xf32, #tpu.memory_space<vmem>>, vector<2x128xf32>
      tpu.vector_store %arg6[%c0_17, %c0_18], %48 {strides = array<i32>} : memref<2x128xf32, #tpu.memory_space<vmem>>, vector<2x128xf32>,
    } else {
    }
    return
  }
  func.func @transform_0(%arg0: i32) -> (i32, i32) {
    %c0_i32 = arith.constant 0 : i32
    %c0_i32_0 = arith.constant 0 : i32
    %c0_i32_1 = arith.constant 0 : i32
    return %c0_i32, %c0_i32_0 : i32, i32
  }
  func.func @transform_1(%arg0: i32) -> (i32, i32) {
    %c0_i32 = arith.constant 0 : i32
    %c0_i32_0 = arith.constant 0 : i32
    return %c0_i32, %arg0 : i32, i32
  }
  func.func @transform_2(%arg0: i32) -> (i32, i32) {
    %c0_i32 = arith.constant 0 : i32
    %c0_i32_0 = arith.constant 0 : i32
    return %c0_i32, %arg0 : i32, i32
  }
  func.func @transform_3(%arg0: i32) -> (i32, i32) {
    %c0_i32 = arith.constant 0 : i32
    %c0_i32_0 = arith.constant 0 : i32
    return %arg0, %c0_i32 : i32, i32
  }
  func.func @transform_4(%arg0: i32) -> (i32, i32) {
    %c0_i32 = arith.constant 0 : i32
    %c0_i32_0 = arith.constant 0 : i32
    %c0_i32_1 = arith.constant 0 : i32
    return %c0_i32, %c0_i32_0 : i32, i32
  }
  func.func @transform_5(%arg0: i32) -> (i32, i32) {
    %c0_i32 = arith.constant 0 : i32
    %c0_i32_0 = arith.constant 0 : i32
    %c0_i32_1 = arith.constant 0 : i32
    return %c0_i32, %c0_i32_0 : i32, i32
  }
}

</mosaic_0001>

<llo_original>
// kernel: model_forward.1
$region0: #{model_forward.1}
  #allocation0 [shape = 'u32[]', space=smem, size = 0x4, offset = 0x4, fixed_abs, tag = 'smem constant byte address 0x4 - core index']
  #allocation1 [shape = 'u32[144,128]{1,0:T(1,128)}', space=vmem, size = 0x12000, scoped, tag = 'internal scratch']
  %s0 = inlined_call_operand.vmem [shape: f32[2,1024], index: 0, kind: input, shape index: {}]
  %s1 = inlined_call_operand.vmem [shape: f32[4,2048], index: 1, kind: input, shape index: {}]
  %s2 = inlined_call_operand.vmem [shape: f32[1,2048], index: 2, kind: input, shape index: {}]
  %s3 = inlined_call_operand.hbm [shape: bf16[2048,128], index: 3, kind: input, shape index: {}]
  %s4 = inlined_call_operand.vmem [shape: f32[1,128], index: 4, kind: input, shape index: {}]
  %s5 = inlined_call_operand.vmem [shape: f32[2,128], index: 5, kind: output, shape index: {}]
  %s6 = sld [smem:[#allocation0]]
  $region65: #{model_forward.1} parent=0
    _
  %s8 = ssub.s32 1, %s6
  %s9 = scalar_select 0, %s8, %s6
  $region1: #{model_forward.1} parent=0
    #allocation2 [shape = 'u8[262144]{0}', space=vmem, size = 0x40000, scoped, tag = 'input window, operand 3']
    #allocation3 [shape = 's32[2]{0}', space=sflag, size = 0x8, scoped, tag = 'scoped memory for model_forward.1']
    %10 = vsyncpa [#allocation3], 0
    %s11 = scalar_lea.sflag [#allocation3], 1
    %12 = vsyncpa %s11, 0
    loop: start=0, step=1, limit=6
    $region2: #{model_forward.1} parent=1 // loop_pre_header
      _
    $region3: #{model_forward.1} parent=1 // loop_header
      %s14 = sphi 0, %s18
      %p15 = scmp.ge.s32.totalorder %s14, 6
      %s22 = sphi 0, %s22
      %s24 = sphi 0, %s22
      %s25 = sphi 0, %s24
      %s39 = sphi 0, %s25
      %s45 = sphi 0, %s47
      %s48 = sphi 0, %s45
      %s49 = sphi 0, %s48
      %s65 = sphi 0, %s49
      %s71 = sphi 0, %s73
      %s74 = sphi 0, %s71
      %s75 = sphi 0, %s74
      %s91 = sphi 0, %s75
      %s97 = sphi 0, %s99
      %s100 = sphi 0, %s97
      %s101 = sphi 0, %s100
      %s117 = sphi 0, %s101
      %s121 = sphi 0, %s121
      %s123 = sphi 0, %s121
      %s124 = sphi 0, %s123
      %s138 = sphi 0, %s124
      %s142 = sphi 0, %s142
      %s144 = sphi 0, %s142
      %s145 = sphi 0, %s144
      %s159 = sphi 0, %s145
    $region4: #{model_forward.1} parent=1 // loop_header_branch
      %17 = sbr.rel (%p15) target = $region8
    $region5: #{model_forward.1} parent=1 // loop_body
      %s19 = ssub.s32 %s14, 1
      %s20 = ssub.s32 %s14, 2
      %s21 = sadd.s32 %s14, 1
      %s23 = sadd.s32 %s22, 1
      %p26 = scmp.eq.s32.totalorder %s14, 3
      %p27 = scmp.ne.s32.totalorder %s22, %s24
      %p28 = scmp.eq.s32.totalorder %s14, 0
      %p29 = por %p27, %p28
      %p30 = scmp.ne.s32.totalorder %s22, %s24
      %p31 = scmp.eq.s32.totalorder %s19, 3
      %p32 = por %p30, %p31
      %p33 = scmp.ne.s32.totalorder %s24, %s25
      %p34 = scmp.eq.s32.totalorder %s19, 0
      %p35 = por %p33, %p34
      %p36 = scmp.ne.s32.totalorder %s24, %s25
      %p37 = scmp.eq.s32.totalorder %s20, 3
      %p38 = por %p36, %p37
      %p40 = scmp.ne.s32.totalorder %s25, %s39
      %p41 = scmp.eq.s32.totalorder %s20, 0
      %p42 = por %p40, %p41
      %s43 = ssub.s32 %s14, %s21
      %p44 = scmp.eq.s32.totalorder %s43, 0
      %s46 = sadd.s32 %s45, 1
      %s47 = scalar_select %p44, %s45, %s46
      %p50 = pneg %p44
      %p51 = scmp.eq.s32.totalorder %s14, 3
      %p52 = por %p50, %p51
      %p53 = scmp.ne.s32.totalorder %s45, %s48
      %p54 = scmp.eq.s32.totalorder %s14, 0
      %p55 = por %p53, %p54
      %p56 = scmp.ne.s32.totalorder %s45, %s48
      %p57 = scmp.eq.s32.totalorder %s19, 3
      %p58 = por %p56, %p57
      %p59 = scmp.ne.s32.totalorder %s48, %s49
      %p60 = scmp.eq.s32.totalorder %s19, 0
      %p61 = por %p59, %p60
      %p62 = scmp.ne.s32.totalorder %s48, %s49
      %p63 = scmp.eq.s32.totalorder %s20, 3
      %p64 = por %p62, %p63
      %p66 = scmp.ne.s32.totalorder %s49, %s65
      %p67 = scmp.eq.s32.totalorder %s20, 0
      %p68 = por %p66, %p67
      %s69 = ssub.s32 %s14, %s21
      %p70 = scmp.eq.s32.totalorder %s69, 0
      %s72 = sadd.s32 %s71, 1
      %s73 = scalar_select %p70, %s71, %s72
      %p76 = pneg %p70
      %p77 = scmp.eq.s32.totalorder %s14, 3
      %p78 = por %p76, %p77
      %p79 = scmp.ne.s32.totalorder %s71, %s74
      %p80 = scmp.eq.s32.totalorder %s14, 0
      %p81 = por %p79, %p80
      %p82 = scmp.ne.s32.totalorder %s71, %s74
      %p83 = scmp.eq.s32.totalorder %s19, 3
      %p84 = por %p82, %p83
      %p85 = scmp.ne.s32.totalorder %s74, %s75
      %p86 = scmp.eq.s32.totalorder %s19, 0
      %p87 = por %p85, %p86
      %p88 = scmp.ne.s32.totalorder %s74, %s75
      %p89 = scmp.eq.s32.totalorder %s20, 3
      %p90 = por %p88, %p89
      %p92 = scmp.ne.s32.totalorder %s75, %s91
      %p93 = scmp.eq.s32.totalorder %s20, 0
      %p94 = por %p92, %p93
      %s95 = ssub.s32 %s14, %s21
      %p96 = scmp.eq.s32.totalorder %s95, 0
      %s98 = sadd.s32 %s97, 1
      %s99 = scalar_select %p96, %s97, %s98
      %p102 = pneg %p96
      %p103 = scmp.eq.s32.totalorder %s14, 3
      %p104 = por %p102, %p103
      %p105 = scmp.ne.s32.totalorder %s97, %s100
      %p106 = scmp.eq.s32.totalorder %s14, 0
      %p107 = por %p105, %p106
      %p108 = scmp.ne.s32.totalorder %s97, %s100
      %p109 = scmp.eq.s32.totalorder %s19, 3
      %p110 = por %p108, %p109
      %p111 = scmp.ne.s32.totalorder %s100, %s101
      %p112 = scmp.eq.s32.totalorder %s19, 0
      %p113 = por %p111, %p112
      %p114 = scmp.ne.s32.totalorder %s100, %s101
      %p115 = scmp.eq.s32.totalorder %s20, 3
      %p116 = por %p114, %p115
      %p118 = scmp.ne.s32.totalorder %s101, %s117
      %p119 = scmp.eq.s32.totalorder %s20, 0
      %p120 = por %p118, %p119
      %s122 = sadd.s32 %s121, 1
      %p125 = scmp.eq.s32.totalorder %s14, 3
      %p126 = scmp.ne.s32.totalorder %s121, %s123
      %p127 = scmp.eq.s32.totalorder %s14, 0
      %p128 = por %p126, %p127
      %p129 = scmp.ne.s32.totalorder %s121, %s123
      %p130 = scmp.eq.s32.totalorder %s19, 3
      %p131 = por %p129, %p130
      %p132 = scmp.ne.s32.totalorder %s123, %s124
      %p133 = scmp.eq.s32.totalorder %s19, 0
      %p134 = por %p132, %p133
      %p135 = scmp.ne.s32.totalorder %s123, %s124
      %p136 = scmp.eq.s32.totalorder %s20, 3
      %p137 = por %p135, %p136
      %p139 = scmp.ne.s32.totalorder %s124, %s138
      %p140 = scmp.eq.s32.totalorder %s20, 0
      %p141 = por %p139, %p140
      %s143 = sadd.s32 %s142, 1
      %p146 = scmp.eq.s32.totalorder %s14, 3
      %p147 = scmp.ne.s32.totalorder %s142, %s144
      %p148 = scmp.eq.s32.totalorder %s14, 0
      %p149 = por %p147, %p148
      %p150 = scmp.ne.s32.totalorder %s142, %s144
      %p151 = scmp.eq.s32.totalorder %s19, 3
      %p152 = por %p150, %p151
      %p153 = scmp.ne.s32.totalorder %s144, %s145
      %p154 = scmp.eq.s32.totalorder %s19, 0
      %p155 = por %p153, %p154
      %p156 = scmp.ne.s32.totalorder %s144, %s145
      %p157 = scmp.eq.s32.totalorder %s20, 3
      %p158 = por %p156, %p157
      %p160 = scmp.ne.s32.totalorder %s145, %s159
      %p161 = scmp.eq.s32.totalorder %s20, 0
      %p162 = por %p160, %p161
      %p163 = scmp.le.s32.totalorder 1, %s14
      %p164 = scmp.lt.s32.totalorder %s14, 5
      %p165 = pnand %p163, %p164
      %p166 = pneg %p165
      // Predicated region
      $region9: #{model_forward.1} parent=5 // pred_check
        _
      $region10: #{model_forward.1} parent=5 // pred_check_branch
        %168 = sbr.rel (%p165) target = $region12
      $region11: #{model_forward.1} parent=5 // pred_region
        %s169 = ssub.s32 %s14, 1
        // Predicated region
        $region13: #{model_forward.1} parent=11 // pred_check
          %p170 = pneg %p35
        $region14: #{model_forward.1} parent=11 // pred_check_branch
          %172 = sbr.rel (%p170) target = $region16
        $region15: #{model_forward.1} parent=11 // pred_region
          _
        $region16: #{model_forward.1} parent=11 // pred_fallthru
          _
        // Predicated region
        $region17: #{model_forward.1} parent=11 // pred_check
          %p173 = pneg %p134
        $region18: #{model_forward.1} parent=11 // pred_check_branch
          %175 = sbr.rel (%p173) target = $region20
        $region19: #{model_forward.1} parent=11 // pred_region
          _
        $region20: #{model_forward.1} parent=11 // pred_fallthru
          _
      $region12: #{model_forward.1} parent=5 // pred_fallthru
        _
      %p176 = scmp.lt.s32.totalorder %s14, 4
      // Predicated region
      $region21: #{model_forward.1} parent=5 // pred_check
        %p177 = pneg %p176
      $region22: #{model_forward.1} parent=5 // pred_check_branch
        %179 = sbr.rel (%p177) target = $region24
      $region23: #{model_forward.1} parent=5 // pred_region
        // Predicated region
        $region25: #{model_forward.1} parent=23 // pred_check
          %p180 = pneg %p55
        $region26: #{model_forward.1} parent=23 // pred_check_branch
          %182 = sbr.rel (%p180) target = $region28
        $region27: #{model_forward.1} parent=23 // pred_region
          %s183 = smul.u32 4, %s14
          %p184 = scmp.lt.s32.totalorder %s183, 15
          %s185 = scalar_select %p184, %s183, 15
          %s186 = smul.addr %s185, 4
          %s187 = scalar_lea.vmem %s1, %s186
          %s188 = smul.u32 4, %s14
        $region28: #{model_forward.1} parent=23 // pred_fallthru
          _
        // Predicated region
        $region29: #{model_forward.1} parent=23 // pred_check
          %p189 = pneg %p81
        $region30: #{model_forward.1} parent=23 // pred_check_branch
          %191 = sbr.rel (%p189) target = $region32
        $region31: #{model_forward.1} parent=23 // pred_region
          %s192 = smul.u32 4, %s14
          %p193 = scmp.lt.s32.totalorder %s192, 15
          %s194 = scalar_select %p193, %s192, 15
          %s195 = scalar_lea.vmem %s2, %s194
          %s196 = smul.u32 4, %s14
        $region32: #{model_forward.1} parent=23 // pred_fallthru
          _
        // Predicated region
        $region33: #{model_forward.1} parent=23 // pred_check
          %p197 = pneg %p107
        $region34: #{model_forward.1} parent=23 // pred_check_branch
          %199 = sbr.rel (%p197) target = $region36
        $region35: #{model_forward.1} parent=23 // pred_region
          %s200 = sand.u32 %s97, 1
          %s201 = scalar_lea.sflag [#allocation3], %s200
          %s202 = sand.u32 %s97, 1
          %s203 = smul.addr %s202, 256
          %s204 = scalar_lea.vmem [#allocation2], %s203
          %s205 = smul.u32 64, %s14
          %s207 = ssub.s32 4096, 4096
          %208 = vsyncadd %s201, %s207
          %s209 = smul.addr %s205, 64
          %s210 = scalar_lea.hbm %s3, %s209
          %s211 = sshll.u32 %s204, 4
          %s212 = int_to_ptr.vmem [resolvable:$true] %s211
          %217 = dma.hbm_to_vmem [thread:$0]  %s210, 4096, %s212, %s201, 64, 64, 4
        $region36: #{model_forward.1} parent=23 // pred_fallthru
          _
      $region24: #{model_forward.1} parent=5 // pred_fallthru
        _
      %p218 = scmp.le.s32.totalorder 1, %s14
      %p219 = scmp.lt.s32.totalorder %s14, 5
      %p220 = pnand %p218, %p219
      %p221 = pneg %p220
      // Predicated region
      $region37: #{model_forward.1} parent=5 // pred_check
        _
      $region38: #{model_forward.1} parent=5 // pred_check_branch
        %223 = sbr.rel (%p220) target = $region40
      $region39: #{model_forward.1} parent=5 // pred_region
        %s224 = ssub.s32 %s14, 1
        %s225 = sand.u32 %s100, 1
        %s226 = scalar_lea.sflag [#allocation3], %s225
        %s227 = sand.u32 %s100, 1
        %s228 = smul.addr %s227, 256
        %s229 = scalar_lea.vmem [#allocation2], %s228
        // Predicated region
        $region41: #{model_forward.1} parent=39 // pred_check
          %p230 = pneg %p113
        $region42: #{model_forward.1} parent=39 // pred_check_branch
          %232 = sbr.rel (%p230) target = $region44
        $region43: #{model_forward.1} parent=39 // pred_region
          %233 = dma.done %s226, 4096
        $region44: #{model_forward.1} parent=39 // pred_fallthru
          _
        %p234 = pneg %p35
        %p235 = pneg %p32
        %s236 = smul.u32 4, %s19
        %p237 = scmp.lt.s32.totalorder %s236, 15
        %s238 = scalar_select %p237, %s236, 15
        %s239 = smul.addr %s238, 4
        %s240 = scalar_lea.vmem %s1, %s239
        %p241 = pneg %p61
        %p242 = pneg %p58
        %s243 = smul.u32 4, %s19
        %p244 = scmp.lt.s32.totalorder %s243, 15
        %s245 = scalar_select %p244, %s243, 15
        %s246 = scalar_lea.vmem %s2, %s245
        %p247 = pneg %p87
        %p248 = pneg %p84
        %s249 = sand.u32 %s100, 1
        %s250 = scalar_lea.sflag [#allocation3], %s249
        %s251 = sand.u32 %s100, 1
        %s252 = smul.addr %s251, 256
        %s253 = scalar_lea.vmem [#allocation2], %s252
        %p254 = pneg %p113
        %p255 = pneg %p110
        %p256 = pneg %p134
        %p257 = pneg %p131
        %p258 = pneg %p155
        %p259 = pneg %p152
        %s260 = smul.u32 4, %s19
        %p261 = scmp.lt.s32.totalorder %s260, 15
        %s262 = scalar_select %p261, %s260, 15
        %s263 = smul.addr %s262, 4
        %s264 = scalar_lea.vmem %s1, %s263
        %s265 = smul.u32 4, %s19
        %s266 = smul.u32 4, %s19
        %p267 = scmp.lt.s32.totalorder %s266, 15
        %s268 = scalar_select %p267, %s266, 15
        %s269 = scalar_lea.vmem %s2, %s268
        %s270 = smul.u32 4, %s19
        %s271 = smul.u32 64, %s19
        %v273 = vld [vmem:[%s0] sm:$0xff]
        %v274 = vld [vmem:[%s0 + $0x8] sm:$0xff]
        %v275 = vld [vmem:[%s264] sm:$0xff]
        %v276 = vld [vmem:[%s264 + $0x8] sm:$0xff]
        %v279 = vunpack.c.l.s4 1983009808
        %v280 = vunpack.c.0.s8 %v279
        %v281 = vlaneseq
        %v282 = vshrl.u32 %v281, 7
        %v283 = vsub.s32 %v280, %v282
        %v284 = vrot.slane %v273, %v283
        %v285 = vcombine.high %v284, %v284
        %vm288 = vcmask 1041408
        %v289 = vsel %vm288, %v284, 0.0
        %v290 = vsel %vm288, %v285, 0.0
        %v291 = vadd.f32 %v289, %v290
        %292 = vadd.xlane.f32.xlu0 %v291
        %v293 = vpop.xlane.xlu0 %292
        %v296 = vlaneseq
        %v297 = vshrl.u32 %v296, 7
        %v298 = vsub.s32 0, %v297
        %v299 = vrot.slane %v275, %v298
        %v300 = vlaneseq
        %v301 = vshrl.u32 %v300, 7
        %v302 = vsub.s32 4, %v301
        %v303 = vrot.slane %v275, %v302
        %v304 = vlaneseq
        %v305 = vshrl.u32 %v304, 7
        %v306 = vsub.s32 0, %v305
        %v307 = vrot.slane %v276, %v306
        %v308 = vlaneseq
        %v309 = vshrl.u32 %v308, 7
        %v310 = vsub.s32 4, %v309
        %v311 = vrot.slane %v276, %v310
        %v316 = vlaneseq
        %v317 = vshrl.u32 %v316, 7
        %v318 = vsub.s32 0, %v317
        %v319 = vrot.slane %v299, %v318
        %v320 = vlaneseq
        %v321 = vshrl.u32 %v320, 7
        %v322 = vsub.s32 0, %v321
        %v323 = vrot.slane %v303, %v322
        %v324 = vlaneseq
        %v325 = vshrl.u32 %v324, 7
        %v326 = vsub.s32 0, %v325
        %v327 = vrot.slane %v307, %v326
        %v328 = vlaneseq
        %v329 = vshrl.u32 %v328, 7
        %v330 = vsub.s32 0, %v329
        %v331 = vrot.slane %v311, %v330
        %v332 = vmul.f32 %v293, %v319
        %v333 = vmul.f32 %v293, %v323
        %v334 = vmul.f32 %v293, %v327
        %v335 = vmul.f32 %v293, %v331
        %v336 = vcombine.high %v273, %v273
        %v338 = vunpack.c.l.s4 1983009808
        %v339 = vunpack.c.0.s8 %v338
        %v340 = vlaneseq
        %v341 = vshrl.u32 %v340, 7
        %v342 = vsub.s32 %v339, %v341
        %v343 = vrot.slane %v336, %v342
        %v344 = vcombine.high %v343, %v343
        %v347 = vsel %vm288, %v343, 0.0
        %v348 = vsel %vm288, %v344, 0.0
        %v349 = vadd.f32 %v347, %v348
        %350 = vadd.xlane.f32.xlu0 %v349
        %v351 = vpop.xlane.xlu0 %350
        %v352 = vlaneseq
        %v353 = vshrl.u32 %v352, 7
        %v354 = vsub.s32 1, %v353
        %v355 = vrot.slane %v275, %v354
        %v356 = vlaneseq
        %v357 = vshrl.u32 %v356, 7
        %v358 = vsub.s32 5, %v357
        %v359 = vrot.slane %v275, %v358
        %v360 = vlaneseq
        %v361 = vshrl.u32 %v360, 7
        %v362 = vsub.s32 1, %v361
        %v363 = vrot.slane %v276, %v362
        %v364 = vlaneseq
        %v365 = vshrl.u32 %v364, 7
        %v366 = vsub.s32 5, %v365
        %v367 = vrot.slane %v276, %v366
        %v372 = vlaneseq
        %v373 = vshrl.u32 %v372, 7
        %v374 = vsub.s32 1, %v373
        %v375 = vrot.slane %v355, %v374
        %v376 = vlaneseq
        %v377 = vshrl.u32 %v376, 7
        %v378 = vsub.s32 1, %v377
        %v379 = vrot.slane %v359, %v378
        %v380 = vlaneseq
        %v381 = vshrl.u32 %v380, 7
        %v382 = vsub.s32 1, %v381
        %v383 = vrot.slane %v363, %v382
        %v384 = vlaneseq
        %v385 = vshrl.u32 %v384, 7
        %v386 = vsub.s32 1, %v385
        %v387 = vrot.slane %v367, %v386
        %v388 = vmul.f32 %v351, %v375
        %v389 = vmul.f32 %v351, %v379
        %v390 = vmul.f32 %v351, %v383
        %v391 = vmul.f32 %v351, %v387
        %v392 = vadd.f32 %v332, %v388
        %v393 = vadd.f32 %v333, %v389
        %v394 = vadd.f32 %v334, %v390
        %v395 = vadd.f32 %v335, %v391
        %v398 = vunpack.c.l.s4 1983009808
        %v399 = vunpack.c.0.s8 %v398
        %v400 = vlaneseq
        %v401 = vshrl.u32 %v400, 7
        %v402 = vsub.s32 %v399, %v401
        %v403 = vrot.slane %v274, %v402
        %v404 = vcombine.high %v403, %v403
        %v407 = vsel %vm288, %v403, 0.0
        %v408 = vsel %vm288, %v404, 0.0
        %v409 = vadd.f32 %v407, %v408
        %410 = vadd.xlane.f32.xlu0 %v409
        %v411 = vpop.xlane.xlu0 %410
        %v412 = vlaneseq
        %v413 = vshrl.u32 %v412, 7
        %v414 = vsub.s32 2, %v413
        %v415 = vrot.slane %v275, %v414
        %v416 = vlaneseq
        %v417 = vshrl.u32 %v416, 7
        %v418 = vsub.s32 6, %v417
        %v419 = vrot.slane %v275, %v418
        %v420 = vlaneseq
        %v421 = vshrl.u32 %v420, 7
        %v422 = vsub.s32 2, %v421
        %v423 = vrot.slane %v276, %v422
        %v424 = vlaneseq
        %v425 = vshrl.u32 %v424, 7
        %v426 = vsub.s32 6, %v425
        %v427 = vrot.slane %v276, %v426
        %v432 = vlaneseq
        %v433 = vshrl.u32 %v432, 7
        %v434 = vsub.s32 2, %v433
        %v435 = vrot.slane %v415, %v434
        %v436 = vlaneseq
        %v437 = vshrl.u32 %v436, 7
        %v438 = vsub.s32 2, %v437
        %v439 = vrot.slane %v419, %v438
        %v440 = vlaneseq
        %v441 = vshrl.u32 %v440, 7
        %v442 = vsub.s32 2, %v441
        %v443 = vrot.slane %v423, %v442
        %v444 = vlaneseq
        %v445 = vshrl.u32 %v444, 7
        %v446 = vsub.s32 2, %v445
        %v447 = vrot.slane %v427, %v446
        %v448 = vmul.f32 %v411, %v435
        %v449 = vmul.f32 %v411, %v439
        %v450 = vmul.f32 %v411, %v443
        %v451 = vmul.f32 %v411, %v447
        %v452 = vadd.f32 %v392, %v448
        %v453 = vadd.f32 %v393, %v449
        %v454 = vadd.f32 %v394, %v450
        %v455 = vadd.f32 %v395, %v451
        %v456 = vcombine.high %v274, %v274
        %v458 = vunpack.c.l.s4 1983009808
        %v459 = vunpack.c.0.s8 %v458
        %v460 = vlaneseq
        %v461 = vshrl.u32 %v460, 7
        %v462 = vsub.s32 %v459, %v461
        %v463 = vrot.slane %v456, %v462
        %v464 = vcombine.high %v463, %v463
        %v467 = vsel %vm288, %v463, 0.0
        %v468 = vsel %vm288, %v464, 0.0
        %v469 = vadd.f32 %v467, %v468
        %470 = vadd.xlane.f32.xlu0 %v469
        %v471 = vpop.xlane.xlu0 %470
        %v472 = vlaneseq
        %v473 = vshrl.u32 %v472, 7
        %v474 = vsub.s32 3, %v473
        %v475 = vrot.slane %v275, %v474
        %v476 = vlaneseq
        %v477 = vshrl.u32 %v476, 7
        %v478 = vsub.s32 7, %v477
        %v479 = vrot.slane %v275, %v478
        %v480 = vlaneseq
        %v481 = vshrl.u32 %v480, 7
        %v482 = vsub.s32 3, %v481
        %v483 = vrot.slane %v276, %v482
        %v484 = vlaneseq
        %v485 = vshrl.u32 %v484, 7
        %v486 = vsub.s32 7, %v485
        %v487 = vrot.slane %v276, %v486
        %v492 = vlaneseq
        %v493 = vshrl.u32 %v492, 7
        %v494 = vsub.s32 3, %v493
        %v495 = vrot.slane %v475, %v494
        %v496 = vlaneseq
        %v497 = vshrl.u32 %v496, 7
        %v498 = vsub.s32 3, %v497
        %v499 = vrot.slane %v479, %v498
        %v500 = vlaneseq
        %v501 = vshrl.u32 %v500, 7
        %v502 = vsub.s32 3, %v501
        %v503 = vrot.slane %v483, %v502
        %v504 = vlaneseq
        %v505 = vshrl.u32 %v504, 7
        %v506 = vsub.s32 3, %v505
        %v507 = vrot.slane %v487, %v506
        %v508 = vmul.f32 %v471, %v495
        %v509 = vmul.f32 %v471, %v499
        %v510 = vmul.f32 %v471, %v503
        %v511 = vmul.f32 %v471, %v507
        %v512 = vadd.f32 %v452, %v508
        %v513 = vadd.f32 %v453, %v509
        %v514 = vadd.f32 %v454, %v510
        %v515 = vadd.f32 %v455, %v511
        %v516 = vld [vmem:[%s269] sm:$0xf]
        %v518 = vlaneseq
        %v519 = vshrl.u32 %v518, 7
        %v520 = vsub.s32 0, %v519
        %v521 = vrot.slane %v516, %v520
        %v522 = vlaneseq
        %v523 = vshrl.u32 %v522, 7
        %v524 = vsub.s32 1, %v523
        %v525 = vrot.slane %v516, %v524
        %v526 = vlaneseq
        %v527 = vshrl.u32 %v526, 7
        %v528 = vsub.s32 2, %v527
        %v529 = vrot.slane %v516, %v528
        %v530 = vlaneseq
        %v531 = vshrl.u32 %v530, 7
        %v532 = vsub.s32 3, %v531
        %v533 = vrot.slane %v516, %v532
        %v538 = vadd.f32 %v512, %v521
        %v539 = vadd.f32 %v513, %v525
        %v540 = vadd.f32 %v514, %v529
        %v541 = vadd.f32 %v515, %v533
        %v542 = vmax.f32 %v538, 0.0
        %v543 = vmax.f32 %v539, 0.0
        %v544 = vmax.f32 %v540, 0.0
        %v545 = vmax.f32 %v541, 0.0
        %v546 = vpack.c.bf16 %v542, %v542
        %v547 = vpack.c.bf16 %v543, %v543
        %v548 = vpack.c.bf16 %v544, %v544
        %v549 = vpack.c.bf16 %v545, %v545
        %v550 = vld [vmem:[%s229] sm:$0xf]
        %v551 = vld [vmem:[%s229 + $0x4] sm:$0xf]
        %v552 = vld [vmem:[%s229 + $0x8] sm:$0xf]
        %v553 = vld [vmem:[%s229 + $0xc] sm:$0xf]
        %v554 = vld [vmem:[%s229 + $0x10] sm:$0xf]
        %v555 = vld [vmem:[%s229 + $0x14] sm:$0xf]
        %v556 = vld [vmem:[%s229 + $0x18] sm:$0xf]
        %v557 = vld [vmem:[%s229 + $0x1c] sm:$0xf]
        %v558 = vld [vmem:[%s229 + $0x20] sm:$0xf]
        %v559 = vld [vmem:[%s229 + $0x24] sm:$0xf]
        %v560 = vld [vmem:[%s229 + $0x28] sm:$0xf]
        %v561 = vld [vmem:[%s229 + $0x2c] sm:$0xf]
        %v562 = vld [vmem:[%s229 + $0x30] sm:$0xf]
        %v563 = vld [vmem:[%s229 + $0x34] sm:$0xf]
        %v564 = vld [vmem:[%s229 + $0x38] sm:$0xf]
        %v565 = vld [vmem:[%s229 + $0x3c] sm:$0xf]
        %v566 = vld [vmem:[%s229 + $0x40] sm:$0xf]
        %v567 = vld [vmem:[%s229 + $0x44] sm:$0xf]
        %v568 = vld [vmem:[%s229 + $0x48] sm:$0xf]
        %v569 = vld [vmem:[%s229 + $0x4c] sm:$0xf]
        %v570 = vld [vmem:[%s229 + $0x50] sm:$0xf]
        %v571 = vld [vmem:[%s229 + $0x54] sm:$0xf]
        %v572 = vld [vmem:[%s229 + $0x58] sm:$0xf]
        %v573 = vld [vmem:[%s229 + $0x5c] sm:$0xf]
        %v574 = vld [vmem:[%s229 + $0x60] sm:$0xf]
        %v575 = vld [vmem:[%s229 + $0x64] sm:$0xf]
        %v576 = vld [vmem:[%s229 + $0x68] sm:$0xf]
        %v577 = vld [vmem:[%s229 + $0x6c] sm:$0xf]
        %v578 = vld [vmem:[%s229 + $0x70] sm:$0xf]
        %v579 = vld [vmem:[%s229 + $0x74] sm:$0xf]
        %v580 = vld [vmem:[%s229 + $0x78] sm:$0xf]
        %v581 = vld [vmem:[%s229 + $0x7c] sm:$0xf]
        %v582 = vld [vmem:[%s229 + $0x80] sm:$0xf]
        %v583 = vld [vmem:[%s229 + $0x84] sm:$0xf]
        %v584 = vld [vmem:[%s229 + $0x88] sm:$0xf]
        %v585 = vld [vmem:[%s229 + $0x8c] sm:$0xf]
        %v586 = vld [vmem:[%s229 + $0x90] sm:$0xf]
        %v587 = vld [vmem:[%s229 + $0x94] sm:$0xf]
        %v588 = vld [vmem:[%s229 + $0x98] sm:$0xf]
        %v589 = vld [vmem:[%s229 + $0x9c] sm:$0xf]
        %v590 = vld [vmem:[%s229 + $0xa0] sm:$0xf]
        %v591 = vld [vmem:[%s229 + $0xa4] sm:$0xf]
        %v592 = vld [vmem:[%s229 + $0xa8] sm:$0xf]
        %v593 = vld [vmem:[%s229 + $0xac] sm:$0xf]
        %v594 = vld [vmem:[%s229 + $0xb0] sm:$0xf]
        %v595 = vld [vmem:[%s229 + $0xb4] sm:$0xf]
        %v596 = vld [vmem:[%s229 + $0xb8] sm:$0xf]
        %v597 = vld [vmem:[%s229 + $0xbc] sm:$0xf]
        %v598 = vld [vmem:[%s229 + $0xc0] sm:$0xf]
        %v599 = vld [vmem:[%s229 + $0xc4] sm:$0xf]
        %v600 = vld [vmem:[%s229 + $0xc8] sm:$0xf]
        %v601 = vld [vmem:[%s229 + $0xcc] sm:$0xf]
        %v602 = vld [vmem:[%s229 + $0xd0] sm:$0xf]
        %v603 = vld [vmem:[%s229 + $0xd4] sm:$0xf]
        %v604 = vld [vmem:[%s229 + $0xd8] sm:$0xf]
        %v605 = vld [vmem:[%s229 + $0xdc] sm:$0xf]
        %v606 = vld [vmem:[%s229 + $0xe0] sm:$0xf]
        %v607 = vld [vmem:[%s229 + $0xe4] sm:$0xf]
        %v608 = vld [vmem:[%s229 + $0xe8] sm:$0xf]
        %v609 = vld [vmem:[%s229 + $0xec] sm:$0xf]
        %v610 = vld [vmem:[%s229 + $0xf0] sm:$0xf]
        %v611 = vld [vmem:[%s229 + $0xf4] sm:$0xf]
        %v612 = vld [vmem:[%s229 + $0xf8] sm:$0xf]
        %v613 = vld [vmem:[%s229 + $0xfc] sm:$0xf]
        %v678 = vunpack.c.l.b16 %v550
        %v679 = vunpack.c.l.b16 %v551
        %v680 = vunpack.c.l.b16 %v552
        %v681 = vunpack.c.l.b16 %v553
        %v682 = vunpack.c.l.b16 %v554
        %v683 = vunpack.c.l.b16 %v555
        %v684 = vunpack.c.l.b16 %v556
        %v685 = vunpack.c.l.b16 %v557
        %v686 = vunpack.c.l.b16 %v558
        %v687 = vunpack.c.l.b16 %v559
        %v688 = vunpack.c.l.b16 %v560
        %v689 = vunpack.c.l.b16 %v561
        %v690 = vunpack.c.l.b16 %v562
        %v691 = vunpack.c.l.b16 %v563
        %v692 = vunpack.c.l.b16 %v564
        %v693 = vunpack.c.l.b16 %v565
        %v694 = vunpack.c.l.b16 %v566
        %v695 = vunpack.c.l.b16 %v567
        %v696 = vunpack.c.l.b16 %v568
        %v697 = vunpack.c.l.b16 %v569
        %v698 = vunpack.c.l.b16 %v570
        %v699 = vunpack.c.l.b16 %v571
        %v700 = vunpack.c.l.b16 %v572
        %v701 = vunpack.c.l.b16 %v573
        %v702 = vunpack.c.l.b16 %v574
        %v703 = vunpack.c.l.b16 %v575
        %v704 = vunpack.c.l.b16 %v576
        %v705 = vunpack.c.l.b16 %v577
        %v706 = vunpack.c.l.b16 %v578
        %v707 = vunpack.c.l.b16 %v579
        %v708 = vunpack.c.l.b16 %v580
        %v709 = vunpack.c.l.b16 %v581
        %v710 = vunpack.c.l.b16 %v582
        %v711 = vunpack.c.l.b16 %v583
        %v712 = vunpack.c.l.b16 %v584
        %v713 = vunpack.c.l.b16 %v585
        %v714 = vunpack.c.l.b16 %v586
        %v715 = vunpack.c.l.b16 %v587
        %v716 = vunpack.c.l.b16 %v588
        %v717 = vunpack.c.l.b16 %v589
        %v718 = vunpack.c.l.b16 %v590
        %v719 = vunpack.c.l.b16 %v591
        %v720 = vunpack.c.l.b16 %v592
        %v721 = vunpack.c.l.b16 %v593
        %v722 = vunpack.c.l.b16 %v594
        %v723 = vunpack.c.l.b16 %v595
        %v724 = vunpack.c.l.b16 %v596
        %v725 = vunpack.c.l.b16 %v597
        %v726 = vunpack.c.l.b16 %v598
        %v727 = vunpack.c.l.b16 %v599
        %v728 = vunpack.c.l.b16 %v600
        %v729 = vunpack.c.l.b16 %v601
        %v730 = vunpack.c.l.b16 %v602
        %v731 = vunpack.c.l.b16 %v603
        %v732 = vunpack.c.l.b16 %v604
        %v733 = vunpack.c.l.b16 %v605
        %v734 = vunpack.c.l.b16 %v606
        %v735 = vunpack.c.l.b16 %v607
        %v736 = vunpack.c.l.b16 %v608
        %v737 = vunpack.c.l.b16 %v609
        %v738 = vunpack.c.l.b16 %v610
        %v739 = vunpack.c.l.b16 %v611
        %v740 = vunpack.c.l.b16 %v612
        %v741 = vunpack.c.l.b16 %v613
        %v742 = vpack.c.b16 %v679, %v678
        %v743 = vpack.c.b16 %v681, %v680
        %v744 = vpack.c.b16 %v683, %v682
        %v745 = vpack.c.b16 %v685, %v684
        %v746 = vpack.c.b16 %v687, %v686
        %v747 = vpack.c.b16 %v689, %v688
        %v748 = vpack.c.b16 %v691, %v690
        %v749 = vpack.c.b16 %v693, %v692
        %v750 = vpack.c.b16 %v695, %v694
        %v751 = vpack.c.b16 %v697, %v696
        %v752 = vpack.c.b16 %v699, %v698
        %v753 = vpack.c.b16 %v701, %v700
        %v754 = vpack.c.b16 %v703, %v702
        %v755 = vpack.c.b16 %v705, %v704
        %v756 = vpack.c.b16 %v707, %v706
        %v757 = vpack.c.b16 %v709, %v708
        %v758 = vpack.c.b16 %v711, %v710
        %v759 = vpack.c.b16 %v713, %v712
        %v760 = vpack.c.b16 %v715, %v714
        %v761 = vpack.c.b16 %v717, %v716
        %v762 = vpack.c.b16 %v719, %v718
        %v763 = vpack.c.b16 %v721, %v720
        %v764 = vpack.c.b16 %v723, %v722
        %v765 = vpack.c.b16 %v725, %v724
        %v766 = vpack.c.b16 %v727, %v726
        %v767 = vpack.c.b16 %v729, %v728
        %v768 = vpack.c.b16 %v731, %v730
        %v769 = vpack.c.b16 %v733, %v732
        %v770 = vpack.c.b16 %v735, %v734
        %v771 = vpack.c.b16 %v737, %v736
        %v772 = vpack.c.b16 %v739, %v738
        %v773 = vpack.c.b16 %v741, %v740
        %806 = vmatprep.subr.bf16.mxu0 0
        %807 = vmatpush1.bf16.msra.mxu0 %v742
        %808 = vmatprep.subr.bf16.mxu0 0
        %809 = vmatpush1.bf16.msra.mxu0 %v743
        %810 = vmatprep.subr.bf16.mxu0 0
        %811 = vmatpush1.bf16.msra.mxu0 %v744
        %812 = vmatprep.subr.bf16.mxu0 0
        %813 = vmatpush1.bf16.msra.mxu0 %v745
        %814 = vmatprep.subr.bf16.mxu0 0
        %815 = vmatpush1.bf16.msra.mxu0 %v746
        %816 = vmatprep.subr.bf16.mxu0 0
        %817 = vmatpush1.bf16.msra.mxu0 %v747
        %818 = vmatprep.subr.bf16.mxu0 0
        %819 = vmatpush1.bf16.msra.mxu0 %v748
        %820 = vmatprep.subr.bf16.mxu0 0
        %821 = vmatpush1.bf16.msra.mxu0 %v749
        %822 = vmatprep.subr.bf16.mxu0 0
        %823 = vmatpush1.bf16.msra.mxu0 %v750
        %824 = vmatprep.subr.bf16.mxu0 0
        %825 = vmatpush1.bf16.msra.mxu0 %v751
        %826 = vmatprep.subr.bf16.mxu0 0
        %827 = vmatpush1.bf16.msra.mxu0 %v752
        %828 = vmatprep.subr.bf16.mxu0 0
        %829 = vmatpush1.bf16.msra.mxu0 %v753
        %830 = vmatprep.subr.bf16.mxu0 0
        %831 = vmatpush1.bf16.msra.mxu0 %v754
        %832 = vmatprep.subr.bf16.mxu0 0
        %833 = vmatpush1.bf16.msra.mxu0 %v755
        %834 = vmatprep.subr.bf16.mxu0 0
        %835 = vmatpush1.bf16.msra.mxu0 %v756
        %836 = vmatprep.subr.bf16.mxu0 0
        %837 = vmatpush1.bf16.msra.mxu0 %v757
        %838 = vmatprep.mubr.bf16.mxu0 %v547
        %839 = vmatmul.mubr.bf16.gmra.mrb[0].mxu0 %v546
        %v840 = vpop.f32.mrb[0].mxu0
        %v841 = vadd.f32 0.0, %v840
        %v842 = vpop.f32.mrb[0].mxu0
        %v843 = vpop.f32.mrb[0].mxu0
        %v844 = vpop.f32.mrb[0].mxu0
        %845 = vdwg.mxu0
        %846 = vmatprep.subr.bf16.mxu0 0
        %847 = vmatpush1.bf16.msra.mxu0 %v758
        %848 = vmatprep.subr.bf16.mxu0 0
        %849 = vmatpush1.bf16.msra.mxu0 %v759
        %850 = vmatprep.subr.bf16.mxu0 0
        %851 = vmatpush1.bf16.msra.mxu0 %v760
        %852 = vmatprep.subr.bf16.mxu0 0
        %853 = vmatpush1.bf16.msra.mxu0 %v761
        %854 = vmatprep.subr.bf16.mxu0 0
        %855 = vmatpush1.bf16.msra.mxu0 %v762
        %856 = vmatprep.subr.bf16.mxu0 0
        %857 = vmatpush1.bf16.msra.mxu0 %v763
        %858 = vmatprep.subr.bf16.mxu0 0
        %859 = vmatpush1.bf16.msra.mxu0 %v764
        %860 = vmatprep.subr.bf16.mxu0 0
        %861 = vmatpush1.bf16.msra.mxu0 %v765
        %862 = vmatprep.subr.bf16.mxu0 0
        %863 = vmatpush1.bf16.msra.mxu0 %v766
        %864 = vmatprep.subr.bf16.mxu0 0
        %865 = vmatpush1.bf16.msra.mxu0 %v767
        %866 = vmatprep.subr.bf16.mxu0 0
        %867 = vmatpush1.bf16.msra.mxu0 %v768
        %868 = vmatprep.subr.bf16.mxu0 0
        %869 = vmatpush1.bf16.msra.mxu0 %v769
        %870 = vmatprep.subr.bf16.mxu0 0
        %871 = vmatpush1.bf16.msra.mxu0 %v770
        %872 = vmatprep.subr.bf16.mxu0 0
        %873 = vmatpush1.bf16.msra.mxu0 %v771
        %874 = vmatprep.subr.bf16.mxu0 0
        %875 = vmatpush1.bf16.msra.mxu0 %v772
        %876 = vmatprep.subr.bf16.mxu0 0
        %877 = vmatpush1.bf16.msra.mxu0 %v773
        %878 = vmatprep.mubr.bf16.mxu0 %v549
        %879 = vmatmul.mubr.bf16.gmra.mrb[0].mxu0 %v548
        %v880 = vpop.f32.mrb[0].mxu0
        %v881 = vadd.f32 %v841, %v880
        %v882 = vpop.f32.mrb[0].mxu0
        %v883 = vpop.f32.mrb[0].mxu0
        %v884 = vpop.f32.mrb[0].mxu0
        %885 = vdwg.mxu0
        %p886 = scmp.eq.s32.totalorder %s19, 0
        // Predicated region
        $region45: #{model_forward.1} parent=39 // pred_check
          %p887 = pneg %p886
        $region46: #{model_forward.1} parent=39 // pred_check_branch
          %889 = sbr.rel (%p887) target = $region48
        $region47: #{model_forward.1} parent=39 // pred_region
          %v890 = vld [vmem:[%s4] sm:$0x1]
          %v892 = vlaneseq
          %v893 = vshrl.u32 %v892, 7
          %v894 = vsub.s32 0, %v893
          %v895 = vrot.slane %v890, %v894
          %v897 = vadd.f32 %v895, %v881
          %898 = vst [vmem:[%s5] sm:$0x3] %v897
        $region48: #{model_forward.1} parent=39 // pred_fallthru
          _
        %p899 = scmp.ne.s32.totalorder %s19, 0
        // Predicated region
        $region49: #{model_forward.1} parent=39 // pred_check
          %p900 = pneg %p899
        $region50: #{model_forward.1} parent=39 // pred_check_branch
          %902 = sbr.rel (%p900) target = $region52
        $region51: #{model_forward.1} parent=39 // pred_region
          %v903 = vld [vmem:[%s5] sm:$0x3]
          %v904 = vadd.f32 %v903, %v881
          %905 = vst [vmem:[%s5] sm:$0x3] %v904
        $region52: #{model_forward.1} parent=39 // pred_fallthru
          _
        // Predicated region
        $region53: #{model_forward.1} parent=39 // pred_check
          %p906 = pneg %p152
        $region54: #{model_forward.1} parent=39 // pred_check_branch
          %908 = sbr.rel (%p906) target = $region56
        $region55: #{model_forward.1} parent=39 // pred_region
          _
        $region56: #{model_forward.1} parent=39 // pred_fallthru
          _
        // Predicated region
        $region57: #{model_forward.1} parent=39 // pred_check
          %p909 = pneg %p152
        $region58: #{model_forward.1} parent=39 // pred_check_branch
          %911 = sbr.rel (%p909) target = $region60
        $region59: #{model_forward.1} parent=39 // pred_region
          _
        $region60: #{model_forward.1} parent=39 // pred_fallthru
          _
      $region40: #{model_forward.1} parent=5 // pred_fallthru
        _
      %p912 = scmp.le.s32.totalorder 2, %s14
      // Predicated region
      $region61: #{model_forward.1} parent=5 // pred_check
        %p913 = pneg %p912
      $region62: #{model_forward.1} parent=5 // pred_check_branch
        %915 = sbr.rel (%p913) target = $region64
      $region63: #{model_forward.1} parent=5 // pred_region
        %s916 = ssub.s32 %s14, 2
      $region64: #{model_forward.1} parent=5 // pred_fallthru
        _
    $region6: #{model_forward.1} parent=1 // loop_footer
      %s18 = sadd.s32 1, %s14
    $region7: #{model_forward.1} parent=1 // loop_footer_branch
      %13 = sbr.rel target = $region3
    $region8: #{model_forward.1} parent=1 // loop_exit
      _
    %917 = vsyncpa [#allocation3], 1
    %s918 = scalar_lea.sflag [#allocation3], 1
    %919 = vsyncpa %s918, 1

</llo_original>
